<compile_context>
chip_gen: v7x
topology: tpu7x:2x2x1
jax: 0.10.0
libtpu: 0.0.40
codegen_flags: <defaults>
</compile_context>

<pallas_src>
import jax
import jax.numpy as jnp
from jax.experimental import pallas as pl
from jax.experimental.pallas import tpu as pltpu

DIM = 5              # input feature dim (matches `dim = 5` in the reference)
OUT = 1              # fc2 output dim
LANE = 128
MAX_TILE_B = 262144  # absolute lane-tile cap (v5e/v6e); v7x derives a smaller cap from VMEM


def _vmem_capacity_bytes():
    """Physical VMEM of the local TPU; conservative 64 MiB (v7x-sized) fallback."""
    try:
        cap = getattr(pltpu.get_tpu_info(), "vmem_capacity_bytes", None)
        if cap:
            return int(cap)
    except Exception:
        pass
    return 64 << 20


def _tiling(batch):
    """Pick the lane tile and the scoped-VMEM limit from the chip's VMEM capacity.

    Per-step footprint is ~224 B per lane of tile (double-buffered in/out blocks, each
    sublane-padded to 8 rows, plus the tanh/product temporaries), so the tile is sized
    for ~half of physical VMEM and the scoped limit is set with extra headroom on top.
    """
    phys = _vmem_capacity_bytes()
    cap = (phys // 2) // 256                       # lanes affordable at ~256 B/lane budget
    cap = max(LANE, min(MAX_TILE_B, (cap // LANE) * LANE))

    if batch <= LANE:
        tile = batch                               # single full-array block
    else:
        tile = min(cap, pl.cdiv(batch, LANE) * LANE)
        if batch >= 2 * LANE:
            # keep >= 2 grid steps so "parallel" can shard across two TensorCores (v7x)
            tile = min(tile, pl.cdiv(batch, 2 * LANE) * LANE)
        tile = max(LANE, tile)

    vmem_limit = int(min(phys - (8 << 20),
                         max(32 << 20, 320 * tile + (16 << 20))))
    return tile, vmem_limit


def net_kernel(x_ref, w_ref, b_ref, o_ref):
    # x_ref: (DIM, TILE_B) VMEM    w_ref: (DIM, OUT) VMEM    b_ref: (OUT,) SMEM
    # o_ref: (OUT, TILE_B) VMEM    -- batch on the lane axis => lane-dense load/store.
    h = x_ref[...]
    if h.dtype != jnp.float32:
        h = h.astype(jnp.float32)              # keep tanh in f32 (v5e has no bf16 VPU/EUP)
    h = jnp.tanh(h)                            # EUP transcendental

    # fc2: full-block VPU multiply against the lane-broadcast weight column, then a
    # sublane reduction on the XLU (no MXU pass for a K=5 contraction).
    acc = jnp.sum(h * w_ref[...], axis=0, keepdims=True)      # (OUT, TILE_B) f32
    o_ref[...] = (acc + b_ref[0]).astype(o_ref.dtype)


def net_forward_bm(x_bm, w2, b2):
    """Batch-minor fast path.

    x_bm: (DIM, B) activations (batch on the lane axis -> no relayout/pad in the wrapper),
    w2: (OUT, DIM) in PyTorch nn.Linear layout, b2: (OUT,).  Returns (OUT, B).
    """
    d, batch = x_bm.shape
    assert d == DIM and w2.shape == (OUT, DIM) and b2.shape == (OUT,)

    tile_b, vmem_limit = _tiling(batch)
    grid = pl.cdiv(batch, tile_b)              # partial last block is clipped by Pallas

    w_col = w2.reshape(DIM, OUT).astype(jnp.float32)   # (5, 1) column, broadcast over lanes
    b_val = b2.reshape(OUT).astype(jnp.float32)        # SMEM scalar

    return pl.pallas_call(
        net_kernel,
        out_shape=jax.ShapeDtypeStruct((OUT, batch), x_bm.dtype),
        grid_spec=pl.GridSpec(
            grid=(grid,),
            in_specs=[
                pl.BlockSpec((DIM, tile_b), lambda i: (0, i)),
                pl.BlockSpec((DIM, OUT), lambda i: (0, 0)),   # constant block: stays resident
                pl.BlockSpec(memory_space=pltpu.MemorySpace.SMEM),
            ],
            out_specs=pl.BlockSpec((OUT, tile_b), lambda i: (0, i)),
        ),
        compiler_params=pltpu.CompilerParams(
            dimension_semantics=("parallel",),
            vmem_limit_bytes=vmem_limit,
        ),
    )(x_bm, w_col, b_val)


def net_forward(x, w2, b2):
    """PyTorch-layout wrapper: x (B, DIM) -> (B, OUT).

    Does one transpose on each side; when the producer can emit batch-minor activations,
    call net_forward_bm directly to avoid the HBM relayout.
    """
    assert x.ndim == 2 and x.shape[1] == DIM
    return net_forward_bm(x.T, w2, b2).T


def reference_forward(x, w2, b2):
    # Precision-safe reference (explicit f32 sum; avoids TPU default matmul precision noise).
    return jnp.sum(jnp.tanh(x.astype(jnp.float32)) * w2.reshape(1, DIM),
                   axis=1, keepdims=True) + b2


if __name__ == "__main__":
    key = jax.random.PRNGKey(0)
    kx, kw1, kb1, kw2, kb2, kx2 = jax.random.split(key, 6)

    # fc1 params mirror __init__ but are unused in forward (exactly as in the PyTorch spec).
    w1 = jax.random.normal(kw1, (5, DIM), dtype=jnp.float32) * 0.1   # unused
    b1 = jax.random.normal(kb1, (5,), dtype=jnp.float32) * 0.1       # unused
    w2 = jax.random.normal(kw2, (OUT, 5), dtype=jnp.float32) * 0.1
    b2 = jax.random.normal(kb2, (OUT,), dtype=jnp.float32) * 0.1

    # 1) PyTorch-layout path at the spec's tiny batch.
    B = 8
    x = jax.random.normal(kx, (B, DIM), dtype=jnp.float32)
    out = jax.block_until_ready(net_forward(x, w2, b2))
    ref = reference_forward(x, w2, b2)
    assert out.shape == (B, OUT)
    assert jnp.allclose(out, ref, atol=1e-5, rtol=1e-5)

    # 2) Batch-minor path: lane-aligned tiles, >= 2 "parallel" grid steps, partial last
    #    block, and no wrapper-side transpose or pad.
    B2 = 1000
    x_bm = jax.random.normal(kx2, (DIM, B2), dtype=jnp.float32)
    out_bm = jax.block_until_ready(net_forward_bm(x_bm, w2, b2))
    ref_bm = reference_forward(x_bm.T, w2, b2).T          # (OUT, B2)
    assert out_bm.shape == (OUT, B2)
    assert jnp.allclose(out_bm, ref_bm, atol=1e-5, rtol=1e-5)

    # 3) bf16 activations (halves HBM bytes); in-kernel compute stays f32, output is bf16.
    x_bf = x_bm.astype(jnp.bfloat16)
    out_bf = jax.block_until_ready(net_forward_bm(x_bf, w2, b2))
    ref_bf = reference_forward(x_bf.T, w2, b2).T
    assert out_bf.dtype == jnp.bfloat16
    assert jnp.allclose(out_bf.astype(jnp.float32), ref_bf, atol=1e-2, rtol=1e-2)

    print("KERNEL_OK")
</pallas_src>

<mosaic_0001>
module attributes {stable_mosaic.version = 11 : i64} {
  func.func @net_kernel(%arg0: i32, %arg1: memref<5x8xf32, #tpu.memory_space<vmem>>, %arg2: memref<5x1xf32, #tpu.memory_space<vmem>>, %arg3: memref<1xf32, #tpu.memory_space<smem>>, %arg4: memref<1x8xf32, #tpu.memory_space<vmem>>) attributes {dimension_semantics = [#tpu.dimension_semantics<parallel>], iteration_bounds = array<i64: 1>, scalar_prefetch = 0 : i64, scratch_operands = 0 : i64, tpu.core_type = #tpu.core_type<tc>, window_params = [{transform_indices = @transform_0, window_bounds = array<i64: 5, 8>}, {pipeline_mode = #tpu.pipeline_mode<synchronous>, transform_indices = @transform_1, window_bounds = array<i64: 5, 1>}, {transform_indices = @transform_2, window_bounds = array<i64: 1>}, {transform_indices = @transform_3, window_bounds = array<i64: 1, 8>}]} {
    %c0 = arith.constant 0 : index
    %c0_0 = arith.constant 0 : index
    %0 = vector.load %arg1[%c0, %c0_0] : memref<5x8xf32, #tpu.memory_space<vmem>>, vector<5x8xf32>
    %1 = math.tanh %0 : vector<5x8xf32>
    %c0_1 = arith.constant 0 : index
    %c0_2 = arith.constant 0 : index
    %2 = vector.load %arg2[%c0_1, %c0_2] : memref<5x1xf32, #tpu.memory_space<vmem>>, vector<5x1xf32>
    %3 = vector.broadcast %2 : vector<5x1xf32> to vector<5x8xf32>
    %4 = arith.mulf %1, %3 : vector<5x8xf32>
    %cst = arith.constant dense<0.000000e+00> : vector<8xf32>
    %5 = vector.multi_reduction <add>, %4, %cst [0] : vector<5x8xf32> to vector<8xf32>
    %6 = vector.shape_cast %5 : vector<8xf32> to vector<1x8xf32>
    %c0_3 = arith.constant 0 : index
    %7 = memref.load %arg3[%c0_3] : memref<1xf32, #tpu.memory_space<smem>>
    %8 = vector.broadcast %7 : f32 to vector<1x8xf32>
    %9 = arith.addf %6, %8 : vector<1x8xf32>
    %c0_4 = arith.constant 0 : index
    %c0_5 = arith.constant 0 : index
    %10 = vector.load %arg4[%c0_4, %c0_5] : memref<1x8xf32, #tpu.memory_space<vmem>>, vector<1x8xf32>
    tpu.vector_store %arg4[%c0_4, %c0_5], %9 {strides = array<i32>} : memref<1x8xf32, #tpu.memory_space<vmem>>, vector<1x8xf32>,
    return
  }
  func.func @transform_0(%arg0: i32) -> (i32, i32) {
    %c0_i32 = arith.constant 0 : i32
    %c0_i32_0 = arith.constant 0 : i32
    return %c0_i32, %arg0 : i32, i32
  }
  func.func @transform_1(%arg0: i32) -> (i32, i32) {
    %c0_i32 = arith.constant 0 : i32
    %c0_i32_0 = arith.constant 0 : i32
    %c0_i32_1 = arith.constant 0 : i32
    return %c0_i32, %c0_i32_0 : i32, i32
  }
  func.func @transform_2(%arg0: i32) -> i32 {
    %c0_i32 = arith.constant 0 : i32
    %c0_i32_0 = arith.constant 0 : i32
    return %c0_i32 : i32
  }
  func.func @transform_3(%arg0: i32) -> (i32, i32) {
    %c0_i32 = arith.constant 0 : i32
    %c0_i32_0 = arith.constant 0 : i32
    return %c0_i32, %arg0 : i32, i32
  }
}

</mosaic_0001>

<llo_original>
// kernel: tpu_custom_call.1
$region0: #{tpu_custom_call.1}
  #allocation0 [shape = 'u32[]', space=smem, size = 0x4, offset = 0x4, fixed_abs, tag = 'smem constant byte address 0x4 - core index']
  #allocation1 [shape = 'u32[144,128]{1,0:T(1,128)}', space=vmem, size = 0x12000, scoped, tag = 'internal scratch']
  #allocation2 [shape = 'f32[1]{0:T(128)S(6)}', space=smem, size = 0x200, scoped, tag = 'scoped memory for tpu_custom_call.1']
  %s0 = inlined_call_operand.vmem [shape: f32[5,8], index: 0, kind: input, shape index: {}]
  %s1 = inlined_call_operand.vmem [shape: f32[5,1], index: 1, kind: input, shape index: {}]
  %s2 = inlined_call_operand.<no memory space> [shape: f32[1], index: 2, kind: input, shape index: {}]
  %s3 = inlined_call_operand.hbm [shape: f32[1,8], index: 3, kind: output, shape index: {}]
  %s4 = sld [smem:[#allocation0]]
  $region22: #{tpu_custom_call.1} parent=0
    _
  %s6 = ssub.s32 1, %s4
  %s7 = scalar_select 0, %s6, %s4
  %8 = sst [smem:[#allocation2]] %s2
  $region1: #{tpu_custom_call.1} parent=0
    #allocation3 [shape = 'u8[512]{0}', space=vmem, size = 0x400, scoped, tag = 'output window, operand 0, single buffered']
    #allocation4 [shape = 's32[1]{0}', space=sflag, size = 0x4, scoped, tag = 'scoped memory for tpu_custom_call.1']
    %9 = vsyncpa [#allocation4], 0
    // Predicated region
    $region2: #{tpu_custom_call.1} parent=1 // pred_check
      _
    $region3: #{tpu_custom_call.1} parent=1 // pred_check_branch
      %11 = sbr.rel (0) target = $region5
    $region4: #{tpu_custom_call.1} parent=1 // pred_region
      _
    $region5: #{tpu_custom_call.1} parent=1 // pred_fallthru
      _
    // Predicated region
    $region6: #{tpu_custom_call.1} parent=1 // pred_check
      _
    $region7: #{tpu_custom_call.1} parent=1 // pred_check_branch
      %13 = sbr.rel (0) target = $region9
    $region8: #{tpu_custom_call.1} parent=1 // pred_region
      _
    $region9: #{tpu_custom_call.1} parent=1 // pred_fallthru
      _
    // Predicated region
    $region10: #{tpu_custom_call.1} parent=1 // pred_check
      _
    $region11: #{tpu_custom_call.1} parent=1 // pred_check_branch
      %15 = sbr.rel (0) target = $region13
    $region12: #{tpu_custom_call.1} parent=1 // pred_region
      _
    $region13: #{tpu_custom_call.1} parent=1 // pred_fallthru
      _
    %v16 = vld [vmem:[%s0] sm:$0x1f]
    %v17 = vtanh.pop %v16
    %v18 = vld [vmem:[%s1] sm:$0x1f]
    %20 = vset.pattern.permute.xlu0 0
    %21 = vperm.xlu0 %20, %v18
    %v22 = vpop.permute.xlu0 %21
    %v24 = vmul.f32 %v17, %v22
    %vm25 = vcmask 61440
    %v26 = vsel %vm25, %v24, 0.0
    %v27 = vrot.slane %v26, 4
    %v28 = vadd.f32 %v26, %v27
    %v29 = vrot.slane %v28, 2
    %v30 = vadd.f32 %v28, %v29
    %v31 = vrot.slane %v30, 1
    %v32 = vadd.f32 %v30, %v31
    %s33 = sld [smem:[#allocation2]]
    %v34 = vstv %s33
    %v35 = vadd.f32 %v32, %v34
    %vm36 = vcmask 57344
    %37 = vst.msk [vmem:[#allocation3] sm:$0x1] %vm36, %v35
    // Predicated region
    $region14: #{tpu_custom_call.1} parent=1 // pred_check
      _
    $region15: #{tpu_custom_call.1} parent=1 // pred_check_branch
      %39 = sbr.rel (0) target = $region17
    $region16: #{tpu_custom_call.1} parent=1 // pred_region
      %s41 = ssub.s32 16, 16
      %42 = vsyncadd [#allocation4], %s41
      %s44 = sshll.u32 [#allocation3], 4
      %s45 = int_to_ptr.vmem [resolvable:$true] %s44
      %47 = dma.vmem_to_hbm [thread:$0]  %s45, 16, %s3, [#allocation4]
    $region17: #{tpu_custom_call.1} parent=1 // pred_fallthru
      _
    // Predicated region
    $region18: #{tpu_custom_call.1} parent=1 // pred_check
      _
    $region19: #{tpu_custom_call.1} parent=1 // pred_check_branch
      %49 = sbr.rel (0) target = $region21
    $region20: #{tpu_custom_call.1} parent=1 // pred_region
      %50 = dma.done [#allocation4], 16
    $region21: #{tpu_custom_call.1} parent=1 // pred_fallthru
      _
    %51 = vsyncpa [#allocation4], 1

</llo_original>
